<compile_context>
chip_gen: v7x
topology: tpu7x:2x2x1
jax: 0.10.0
libtpu: 0.0.40
codegen_flags: <defaults>
</compile_context>

<pallas_src>
import functools
import math

import jax
import jax.numpy as jnp
from jax.experimental import pallas as pl
from jax.experimental.pallas import tpu as pltpu


def _round_up(x, m):
    return ((x + m - 1) // m) * m


def _vmem_capacity_bytes():
    """Per-core VMEM capacity in bytes; conservative fallback if unknown."""
    try:
        cap = getattr(pltpu.get_tpu_info(), "vmem_capacity_bytes", None)
        if cap:
            return int(min(int(cap), 128 << 20))
    except Exception:
        pass
    return 64 << 20  # v7x per-TC size: safe on every generation


# ------------------------------ kernels -------------------------------------

def _pos_enc_kernel(x_ref, pos_ref, per_ref, phase_ref, o_ref, *, inv_n):
    """Unpacked path: one logical row per physical row.

    x_ref:     (tm, E)  io dtype
    pos_ref:   (tm, N)  f32
    per_ref:   (N, E)   f32 = [sin-half periods | cos-half periods | 0 if odd]
    phase_ref: (1, E)   f32 = [0 ...            | pi/2 ...         | 0]
    o_ref:     (tm, E)  io dtype
    """
    n_seq = per_ref.shape[0]
    phase = phase_ref[...]
    acc = None
    # N is tiny (e.g. 2): fully unrolled, every temp stays (tm, E)-dense.
    for n in range(n_seq):
        pre = pos_ref[:, n:n + 1] * per_ref[n:n + 1, :] + phase
        s = jnp.sin(pre)                      # cos(x) == sin(x + pi/2)
        acc = s if acc is None else acc + s
    o_ref[...] = (x_ref[...].astype(jnp.float32) + acc * inv_n).astype(o_ref.dtype)


def _pos_enc_packed_kernel(x_ref, pos_ref, p_ref, phase_ref, o_ref, *, inv_n):
    """Packed path: G = 128 // E logical rows per 128-lane physical row.

    x_ref:     (tm, G*E)       io dtype
    pos_ref:   (tm, G*N)       f32
    p_ref:     (N, G*N, G*E)   f32 block-diagonal periods matrices
    phase_ref: (1, G*E)        f32 phase table tiled G times
    o_ref:     (tm, G*E)       io dtype
    """
    n_seq = p_ref.shape[0]
    pos = pos_ref[...]
    phase = phase_ref[...]
    acc = None
    for n in range(n_seq):
        # Tiny-K (K = G*N) MXU matmul expands per-group positions to dense
        # lanes with the periods already folded in (different VLIW slot than
        # the VALU-bound sin -> nearly free).
        pre = jnp.dot(pos, p_ref[n], preferred_element_type=jnp.float32) + phase
        s = jnp.sin(pre)
        acc = s if acc is None else acc + s
    o_ref[...] = (x_ref[...].astype(jnp.float32) + acc * inv_n).astype(o_ref.dtype)


# ------------------------------ wrapper --------------------------------------

class PositionalEncodingLayerPallas:
    def __init__(self, embedding_dim, sequence_dim, base_periods_pre_exp=None):
        self.embedding_dim = embedding_dim
        self.N = sequence_dim
        if base_periods_pre_exp is None:
            base_periods_pre_exp = [
                -2 * math.log(10000.0) / embedding_dim for _ in range(self.N)
            ]
        self.base_periods_pre_exp = base_periods_pre_exp
        self.odd_embedding = embedding_dim % 2

        half = embedding_dim // 2
        # periods[n, k] = exp(k * bppe[n])  -- same as the PyTorch buffer
        periods = jnp.stack(
            [jnp.exp(jnp.arange(half, dtype=jnp.float32) * bppe)
             for bppe in self.base_periods_pre_exp],
            axis=0,
        )                                                   # (N, E//2)

        # Full-E tables: sin half | cos half | zero column (odd E).
        zeros_odd = jnp.zeros((self.N, self.odd_embedding), jnp.float32)
        self.periods_full = jnp.concatenate([periods, periods, zeros_odd],
                                            axis=-1)        # (N, E)
        self.phase_full = jnp.concatenate(
            [jnp.zeros((half,), jnp.float32),
             jnp.full((half,), 0.5 * math.pi, jnp.float32),
             jnp.zeros((self.odd_embedding,), jnp.float32)],
        )[None, :]                                          # (1, E)

        # Row-packing setup for small E dividing 128.
        E, N = embedding_dim, self.N
        self.G = 128 // E if (E < 128 and 128 % E == 0) else 1
        if self.G > 1:
            G = self.G
            P = jnp.zeros((N, G * N, G * E), jnp.float32)
            for n in range(N):
                for g in range(G):
                    P = P.at[n, g * N + n, g * E:(g + 1) * E].set(
                        self.periods_full[n])
            self.periods_packed = P                          # (N, G*N, G*E)
            self.phase_packed = jnp.tile(self.phase_full, (1, G))  # (1, G*E)

    def __call__(self, X, positions, *, tm=1024):
        E, N = self.embedding_dim, self.N
        assert X.shape[-1] == E
        assert positions.shape[-1] == N
        assert X.shape[:-1] == positions.shape[:-1]

        lead_shape = X.shape[:-1]
        M = int(math.prod(lead_shape)) if lead_shape else 1

        # Keep the caller's floating dtype in HBM (bf16 stays bf16); math is f32.
        io_dtype = X.dtype if jnp.issubdtype(X.dtype, jnp.floating) else jnp.float32
        bytes_io = jnp.dtype(io_dtype).itemsize

        # Flattening reshapes are free for contiguous inputs; positions cast is tiny.
        x_flat = X.reshape(M, E).astype(io_dtype)
        pos_flat = positions.reshape(M, N).astype(jnp.float32)

        # Row packing only when it needs no padding pass.
        G = self.G if (self.G > 1 and M % self.G == 0) else 1
        if G > 1:
            rows, width, pw = M // G, G * E, G * N
            x_in = x_flat.reshape(rows, width)                # free view
            pos_in = pos_flat.reshape(rows, pw)               # free view
            per_tab, phase_tab = self.periods_packed, self.phase_packed
            kernel = functools.partial(_pos_enc_packed_kernel, inv_n=1.0 / float(N))
            per_spec = pl.BlockSpec((N, pw, width), lambda i: (0, 0, 0))
        else:
            rows, width, pw = M, E, N
            x_in, pos_in = x_flat, pos_flat
            per_tab, phase_tab = self.periods_full, self.phase_full
            kernel = functools.partial(_pos_enc_kernel, inv_n=1.0 / float(N))
            per_spec = pl.BlockSpec((N, width), lambda i: (0, 0))

        # Tile size: VMEM-budget capped (generation aware), and capped at
        # ~half the rows so the grid has >= 2 steps and both v7x TCs get work.
        vmem_cap = _vmem_capacity_bytes()
        tile_budget = min(vmem_cap * 5 // 8, 96 << 20)        # 40 MiB on 64 MiB parts, 80 MiB on 128 MiB parts
        per_row_bytes = 4 * width * bytes_io + 2 * pw * 4     # 2x(x) + 2x(out) + 2x(pos)
        tm_vmem = max(8, (tile_budget // max(per_row_bytes, 1)) // 8 * 8)
        tm_split = max(8, _round_up(pl.cdiv(rows, 2), 8))
        tm_eff = max(8, (min(int(tm), tm_vmem, tm_split) // 8) * 8)

        grid = (pl.cdiv(rows, tm_eff),)

        table_bytes = int(per_tab.size) * 4 + int(phase_tab.size) * 4
        vmem_need = per_row_bytes * tm_eff + 2 * table_bytes
        vmem_limit = int(min(max(vmem_need + (8 << 20), 24 << 20),
                             vmem_cap * 23 // 32))

        cost = pl.CostEstimate(
            flops=int(6 * M * E * N),
            transcendentals=int(M * E * N),
            bytes_accessed=int(2 * M * E * bytes_io + M * N * 4 + table_bytes),
        )

        out_flat = pl.pallas_call(
            kernel,
            out_shape=jax.ShapeDtypeStruct((rows, width), io_dtype),
            grid_spec=pltpu.PrefetchScalarGridSpec(
                num_scalar_prefetch=0,
                grid=grid,
                in_specs=[
                    pl.BlockSpec((tm_eff, width), lambda i: (i, 0)),  # X tile
                    pl.BlockSpec((tm_eff, pw), lambda i: (i, 0)),     # positions
                    per_spec,                                         # periods table
                    pl.BlockSpec((1, width), lambda i: (0, 0)),       # phase table
                ],
                out_specs=pl.BlockSpec((tm_eff, width), lambda i: (i, 0)),
            ),
            compiler_params=pltpu.CompilerParams(
                dimension_semantics=("parallel",),
                vmem_limit_bytes=vmem_limit,
            ),
            cost_estimate=cost,
        )(x_in, pos_in, per_tab, phase_tab)

        return out_flat.reshape(*lead_shape, E)


def _reference(layer, X, positions):
    """Pure-JAX replica of the PyTorch forward, for verification."""
    half = layer.embedding_dim // 2
    periods = jnp.stack(
        [jnp.exp(jnp.arange(half, dtype=jnp.float32) * bppe)
         for bppe in layer.base_periods_pre_exp], axis=0)          # (N, E//2)
    pre = positions.astype(jnp.float32)[..., None] * periods       # (..., N, E//2)
    pieces = [jnp.sin(pre), jnp.cos(pre)]
    if layer.odd_embedding:
        pieces.append(jnp.zeros(pre.shape[:-1] + (1,), jnp.float32))
    full_encoding = jnp.concatenate(pieces, axis=-1)               # (..., N, E)
    pos_enc = jnp.mean(full_encoding, axis=-2)                     # (..., E)
    return X.astype(jnp.float32) + pos_enc


if __name__ == "__main__":
    # 8x8 "board" (2-D sequence), batch=2, embedding_dim=32.
    key = jax.random.PRNGKey(0)
    k_x, _ = jax.random.split(key)

    B, D1, D2, E, N = 2, 8, 8, 32, 2
    X = jax.random.normal(k_x, (B, D1, D2, E), dtype=jnp.float32)

    # positions = index of each cell along each sequence dim
    r = jnp.arange(D1, dtype=jnp.float32)
    c = jnp.arange(D2, dtype=jnp.float32)
    pos_grid = jnp.stack(jnp.meshgrid(r, c, indexing="ij"), axis=-1)  # (D1, D2, 2)
    positions = jnp.broadcast_to(pos_grid, (B, D1, D2, N))

    layer = PositionalEncodingLayerPallas(embedding_dim=E, sequence_dim=N)

    # Packed path (E=32 -> G=4, rows divisible): multi-step grid, MXU expand.
    out = jax.block_until_ready(layer(X, positions))
    expected = _reference(layer, X, positions)
    assert out.shape == (B, D1, D2, E), out.shape
    assert out.dtype == X.dtype, out.dtype
    assert jnp.allclose(out, expected, atol=1e-5, rtol=1e-5), (
        float(jnp.max(jnp.abs(out - expected))))

    # Non-divisible row count + bf16: unpacked fallback, partial (masked) block.
    Xb = X[:, :5, :7, :].astype(jnp.bfloat16)
    pb = positions[:, :5, :7, :]
    outb = jax.block_until_ready(layer(Xb, pb))
    expb = _reference(layer, Xb.astype(jnp.float32), pb)
    assert outb.shape == Xb.shape and outb.dtype == jnp.bfloat16
    assert jnp.allclose(outb.astype(jnp.float32), expb, atol=2e-2, rtol=2e-2)

    # Odd embedding dim (zero column) with a 1-D sequence.
    layer_odd = PositionalEncodingLayerPallas(embedding_dim=7, sequence_dim=1)
    Xo = jax.random.normal(k_x, (3, 5, 7), dtype=jnp.float32)
    po = jnp.broadcast_to(jnp.arange(5, dtype=jnp.float32)[None, :, None], (3, 5, 1))
    outo = jax.block_until_ready(layer_odd(Xo, po))
    expo = _reference(layer_odd, Xo, po)
    assert jnp.allclose(outo, expo, atol=1e-5, rtol=1e-5)

    print("KERNEL_OK")
</pallas_src>

<mosaic_0001>
module attributes {stable_mosaic.version = 11 : i64} {
  func.func @_pos_enc_packed_kernel(%arg0: i32, %arg1: memref<16x128xf32, #tpu.memory_space<vmem>>, %arg2: memref<16x8xf32, #tpu.memory_space<vmem>>, %arg3: memref<2x8x128xf32, #tpu.memory_space<vmem>>, %arg4: memref<1x128xf32, #tpu.memory_space<vmem>>, %arg5: memref<16x128xf32, #tpu.memory_space<vmem>>) attributes {dimension_semantics = [#tpu.dimension_semantics<parallel>], iteration_bounds = array<i64: 2>, scalar_prefetch = 0 : i64, scratch_operands = 0 : i64, tpu.core_type = #tpu.core_type<tc>, window_params = [{transform_indices = @transform_0, window_bounds = array<i64: 16, 128>}, {transform_indices = @transform_1, window_bounds = array<i64: 16, 8>}, {pipeline_mode = #tpu.pipeline_mode<synchronous>, transform_indices = @transform_2, window_bounds = array<i64: 2, 8, 128>}, {pipeline_mode = #tpu.pipeline_mode<synchronous>, transform_indices = @transform_3, window_bounds = array<i64: 1, 128>}, {transform_indices = @transform_4, window_bounds = array<i64: 16, 128>}]} {
    %c0 = arith.constant 0 : index
    %c0_0 = arith.constant 0 : index
    %0 = vector.load %arg2[%c0, %c0_0] : memref<16x8xf32, #tpu.memory_space<vmem>>, vector<16x8xf32>
    %c0_1 = arith.constant 0 : index
    %c0_2 = arith.constant 0 : index
    %1 = vector.load %arg4[%c0_1, %c0_2] : memref<1x128xf32, #tpu.memory_space<vmem>>, vector<1x128xf32>
    %c0_3 = arith.constant 0 : index
    %c0_4 = arith.constant 0 : index
    %c0_5 = arith.constant 0 : index
    %2 = vector.load %arg3[%c0_3, %c0_4, %c0_5] : memref<2x8x128xf32, #tpu.memory_space<vmem>>, vector<1x8x128xf32>
    %3 = vector.shape_cast %2 : vector<1x8x128xf32> to vector<8x128xf32>
    %cst = arith.constant dense<0.000000e+00> : vector<16x128xf32>
    %4 = tpu.matmul %0, %3, %cst {dimension_numbers = #tpu.dot_dimension_numbers<[1], [0], [0], [1], [0, 0, 1, 1], [], []>} : vector<16x8xf32>, vector<8x128xf32>, vector<16x128xf32> -> vector<16x128xf32>
    %5 = vector.broadcast %1 : vector<1x128xf32> to vector<16x128xf32>
    %6 = arith.addf %4, %5 : vector<16x128xf32>
    %7 = math.sin %6 : vector<16x128xf32>
    %c1 = arith.constant 1 : index
    %c0_6 = arith.constant 0 : index
    %c0_7 = arith.constant 0 : index
    %8 = vector.load %arg3[%c1, %c0_6, %c0_7] : memref<2x8x128xf32, #tpu.memory_space<vmem>>, vector<1x8x128xf32>
    %9 = vector.shape_cast %8 : vector<1x8x128xf32> to vector<8x128xf32>
    %cst_8 = arith.constant dense<0.000000e+00> : vector<16x128xf32>
    %10 = tpu.matmul %0, %9, %cst_8 {dimension_numbers = #tpu.dot_dimension_numbers<[1], [0], [0], [1], [0, 0, 1, 1], [], []>} : vector<16x8xf32>, vector<8x128xf32>, vector<16x128xf32> -> vector<16x128xf32>
    %11 = vector.broadcast %1 : vector<1x128xf32> to vector<16x128xf32>
    %12 = arith.addf %10, %11 : vector<16x128xf32>
    %13 = math.sin %12 : vector<16x128xf32>
    %14 = arith.addf %7, %13 : vector<16x128xf32>
    %c0_9 = arith.constant 0 : index
    %c0_10 = arith.constant 0 : index
    %15 = vector.load %arg1[%c0_9, %c0_10] : memref<16x128xf32, #tpu.memory_space<vmem>>, vector<16x128xf32>
    %cst_11 = arith.constant 5.000000e-01 : f32
    %16 = vector.broadcast %cst_11 : f32 to vector<16x128xf32>
    %17 = arith.mulf %14, %16 : vector<16x128xf32>
    %18 = arith.addf %15, %17 : vector<16x128xf32>
    %c0_12 = arith.constant 0 : index
    %c0_13 = arith.constant 0 : index
    %19 = vector.load %arg5[%c0_12, %c0_13] : memref<16x128xf32, #tpu.memory_space<vmem>>, vector<16x128xf32>
    tpu.vector_store %arg5[%c0_12, %c0_13], %18 {strides = array<i32>} : memref<16x128xf32, #tpu.memory_space<vmem>>, vector<16x128xf32>,
    return
  }
  func.func @transform_0(%arg0: i32) -> (i32, i32) {
    %c0_i32 = arith.constant 0 : i32
    %c0_i32_0 = arith.constant 0 : i32
    return %arg0, %c0_i32 : i32, i32
  }
  func.func @transform_1(%arg0: i32) -> (i32, i32) {
    %c0_i32 = arith.constant 0 : i32
    %c0_i32_0 = arith.constant 0 : i32
    return %arg0, %c0_i32 : i32, i32
  }
  func.func @transform_2(%arg0: i32) -> (i32, i32, i32) {
    %c0_i32 = arith.constant 0 : i32
    %c0_i32_0 = arith.constant 0 : i32
    %c0_i32_1 = arith.constant 0 : i32
    %c0_i32_2 = arith.constant 0 : i32
    return %c0_i32, %c0_i32_0, %c0_i32_1 : i32, i32, i32
  }
  func.func @transform_3(%arg0: i32) -> (i32, i32) {
    %c0_i32 = arith.constant 0 : i32
    %c0_i32_0 = arith.constant 0 : i32
    %c0_i32_1 = arith.constant 0 : i32
    return %c0_i32, %c0_i32_0 : i32, i32
  }
  func.func @transform_4(%arg0: i32) -> (i32, i32) {
    %c0_i32 = arith.constant 0 : i32
    %c0_i32_0 = arith.constant 0 : i32
    return %arg0, %c0_i32 : i32, i32
  }
}

</mosaic_0001>

<llo_original>
// kernel: tpu_custom_call.1
$region0: #{tpu_custom_call.1}
  #allocation0 [shape = 'u32[]', space=smem, size = 0x4, offset = 0x4, fixed_abs, tag = 'smem constant byte address 0x4 - core index']
  #allocation1 [shape = 'u32[144,128]{1,0:T(1,128)}', space=vmem, size = 0x12000, scoped, tag = 'internal scratch']
  %s0 = inlined_call_operand.vmem [shape: f32[32,128], index: 0, kind: input, shape index: {}]
  %s1 = inlined_call_operand.vmem [shape: f32[32,8], index: 1, kind: input, shape index: {}]
  %s2 = inlined_call_operand.hbm [shape: f32[2,8,128], index: 2, kind: input, shape index: {}]
  %s3 = inlined_call_operand.vmem [shape: f32[1,128], index: 3, kind: input, shape index: {}]
  %s4 = inlined_call_operand.hbm [shape: f32[32,128], index: 4, kind: output, shape index: {}]
  %s5 = sld [smem:[#allocation0]]
  $region53: #{tpu_custom_call.1} parent=0
    _
  %s7 = ssub.s32 1, %s5
  %s8 = scalar_select 0, %s7, %s5
  $region1: #{tpu_custom_call.1} parent=0
    #allocation2 [shape = 'u8[8192]{0}', space=vmem, size = 0x2000, scoped, tag = 'input window, operand 2, single buffered']
    #allocation3 [shape = 's32[2]{0}', space=sflag, size = 0x8, scoped, tag = 'scoped memory for tpu_custom_call.1']
    #allocation4 [shape = 's32[2]{0}', space=sflag, size = 0x8, scoped, tag = 'scoped memory for tpu_custom_call.1']
    #allocation5 [shape = 'u8[16384]{0}', space=vmem, size = 0x4000, scoped, tag = 'output window, operand 0']
    %9 = vsyncpa [#allocation3], 0
    %10 = vsyncpa [#allocation4], 0
    %s11 = scalar_lea.sflag [#allocation4], 1
    %12 = vsyncpa %s11, 0
    loop: start=0, step=1, limit=4
    $region2: #{tpu_custom_call.1} parent=1 // loop_pre_header
      _
    $region3: #{tpu_custom_call.1} parent=1 // loop_header
      %s14 = sphi 0, %s18
      %p15 = scmp.ge.s32.totalorder %s14, 4
      %s24 = sphi 0, %s26
      %s27 = sphi 0, %s24
      %s28 = sphi 0, %s27
      %s44 = sphi 0, %s28
      %s50 = sphi 0, %s52
      %s53 = sphi 0, %s50
      %s54 = sphi 0, %s53
      %s70 = sphi 0, %s54
      %s74 = sphi 0, %s74
      %s76 = sphi 0, %s74
      %s77 = sphi 0, %s76
      %s91 = sphi 0, %s77
      %s95 = sphi 0, %s95
      %s97 = sphi 0, %s95
      %s98 = sphi 0, %s97
      %s112 = sphi 0, %s98
      %s118 = sphi 0, %s120
      %s121 = sphi 0, %s118
      %s122 = sphi 0, %s121
      %s138 = sphi 0, %s122
    $region4: #{tpu_custom_call.1} parent=1 // loop_header_branch
      %17 = sbr.rel (%p15) target = $region8
    $region5: #{tpu_custom_call.1} parent=1 // loop_body
      %s19 = ssub.s32 %s14, 1
      %s20 = ssub.s32 %s14, 2
      %s21 = sadd.s32 %s14, 1
      %s22 = ssub.s32 %s14, %s21
      %p23 = scmp.eq.s32.totalorder %s22, 0
      %s25 = sadd.s32 %s24, 1
      %s26 = scalar_select %p23, %s24, %s25
      %p29 = pneg %p23
      %p30 = scmp.eq.s32.totalorder %s14, 1
      %p31 = por %p29, %p30
      %p32 = scmp.ne.s32.totalorder %s24, %s27
      %p33 = scmp.eq.s32.totalorder %s14, 0
      %p34 = por %p32, %p33
      %p35 = scmp.ne.s32.totalorder %s24, %s27
      %p36 = scmp.eq.s32.totalorder %s19, 1
      %p37 = por %p35, %p36
      %p38 = scmp.ne.s32.totalorder %s27, %s28
      %p39 = scmp.eq.s32.totalorder %s19, 0
      %p40 = por %p38, %p39
      %p41 = scmp.ne.s32.totalorder %s27, %s28
      %p42 = scmp.eq.s32.totalorder %s20, 1
      %p43 = por %p41, %p42
      %p45 = scmp.ne.s32.totalorder %s28, %s44
      %p46 = scmp.eq.s32.totalorder %s20, 0
      %p47 = por %p45, %p46
      %s48 = ssub.s32 %s14, %s21
      %p49 = scmp.eq.s32.totalorder %s48, 0
      %s51 = sadd.s32 %s50, 1
      %s52 = scalar_select %p49, %s50, %s51
      %p55 = pneg %p49
      %p56 = scmp.eq.s32.totalorder %s14, 1
      %p57 = por %p55, %p56
      %p58 = scmp.ne.s32.totalorder %s50, %s53
      %p59 = scmp.eq.s32.totalorder %s14, 0
      %p60 = por %p58, %p59
      %p61 = scmp.ne.s32.totalorder %s50, %s53
      %p62 = scmp.eq.s32.totalorder %s19, 1
      %p63 = por %p61, %p62
      %p64 = scmp.ne.s32.totalorder %s53, %s54
      %p65 = scmp.eq.s32.totalorder %s19, 0
      %p66 = por %p64, %p65
      %p67 = scmp.ne.s32.totalorder %s53, %s54
      %p68 = scmp.eq.s32.totalorder %s20, 1
      %p69 = por %p67, %p68
      %p71 = scmp.ne.s32.totalorder %s54, %s70
      %p72 = scmp.eq.s32.totalorder %s20, 0
      %p73 = por %p71, %p72
      %s75 = sadd.s32 %s74, 1
      %p78 = scmp.eq.s32.totalorder %s14, 1
      %p79 = scmp.ne.s32.totalorder %s74, %s76
      %p80 = scmp.eq.s32.totalorder %s14, 0
      %p81 = por %p79, %p80
      %p82 = scmp.ne.s32.totalorder %s74, %s76
      %p83 = scmp.eq.s32.totalorder %s19, 1
      %p84 = por %p82, %p83
      %p85 = scmp.ne.s32.totalorder %s76, %s77
      %p86 = scmp.eq.s32.totalorder %s19, 0
      %p87 = por %p85, %p86
      %p88 = scmp.ne.s32.totalorder %s76, %s77
      %p89 = scmp.eq.s32.totalorder %s20, 1
      %p90 = por %p88, %p89
      %p92 = scmp.ne.s32.totalorder %s77, %s91
      %p93 = scmp.eq.s32.totalorder %s20, 0
      %p94 = por %p92, %p93
      %s96 = sadd.s32 %s95, 1
      %p99 = scmp.eq.s32.totalorder %s14, 1
      %p100 = scmp.ne.s32.totalorder %s95, %s97
      %p101 = scmp.eq.s32.totalorder %s14, 0
      %p102 = por %p100, %p101
      %p103 = scmp.ne.s32.totalorder %s95, %s97
      %p104 = scmp.eq.s32.totalorder %s19, 1
      %p105 = por %p103, %p104
      %p106 = scmp.ne.s32.totalorder %s97, %s98
      %p107 = scmp.eq.s32.totalorder %s19, 0
      %p108 = por %p106, %p107
      %p109 = scmp.ne.s32.totalorder %s97, %s98
      %p110 = scmp.eq.s32.totalorder %s20, 1
      %p111 = por %p109, %p110
      %p113 = scmp.ne.s32.totalorder %s98, %s112
      %p114 = scmp.eq.s32.totalorder %s20, 0
      %p115 = por %p113, %p114
      %s116 = ssub.s32 %s14, %s21
      %p117 = scmp.eq.s32.totalorder %s116, 0
      %s119 = sadd.s32 %s118, 1
      %s120 = scalar_select %p117, %s118, %s119
      %p123 = pneg %p117
      %p124 = scmp.eq.s32.totalorder %s14, 1
      %p125 = por %p123, %p124
      %p126 = scmp.ne.s32.totalorder %s118, %s121
      %p127 = scmp.eq.s32.totalorder %s14, 0
      %p128 = por %p126, %p127
      %p129 = scmp.ne.s32.totalorder %s118, %s121
      %p130 = scmp.eq.s32.totalorder %s19, 1
      %p131 = por %p129, %p130
      %p132 = scmp.ne.s32.totalorder %s121, %s122
      %p133 = scmp.eq.s32.totalorder %s19, 0
      %p134 = por %p132, %p133
      %p135 = scmp.ne.s32.totalorder %s121, %s122
      %p136 = scmp.eq.s32.totalorder %s20, 1
      %p137 = por %p135, %p136
      %p139 = scmp.ne.s32.totalorder %s122, %s138
      %p140 = scmp.eq.s32.totalorder %s20, 0
      %p141 = por %p139, %p140
      %p142 = scmp.le.s32.totalorder 1, %s14
      %p143 = scmp.lt.s32.totalorder %s14, 3
      %p144 = pnand %p142, %p143
      %p145 = pneg %p144
      // Predicated region
      $region9: #{tpu_custom_call.1} parent=5 // pred_check
        _
      $region10: #{tpu_custom_call.1} parent=5 // pred_check_branch
        %147 = sbr.rel (%p144) target = $region12
      $region11: #{tpu_custom_call.1} parent=5 // pred_region
        %s148 = ssub.s32 %s14, 1
        // Predicated region
        $region13: #{tpu_custom_call.1} parent=11 // pred_check
          %p149 = pneg %p87
        $region14: #{tpu_custom_call.1} parent=11 // pred_check_branch
          %151 = sbr.rel (%p149) target = $region16
        $region15: #{tpu_custom_call.1} parent=11 // pred_region
          %s153 = ssub.s32 256, 256
          %154 = vsyncadd [#allocation3], %s153
          %s155 = sshll.u32 [#allocation2], 4
          %s156 = int_to_ptr.vmem [resolvable:$true] %s155
          %161 = dma.hbm_to_vmem [thread:$0]  %s2, 256, %s156, [#allocation3], 128, 128, 8
        $region16: #{tpu_custom_call.1} parent=11 // pred_fallthru
          _
        // Predicated region
        $region17: #{tpu_custom_call.1} parent=11 // pred_check
          %p162 = pneg %p108
        $region18: #{tpu_custom_call.1} parent=11 // pred_check_branch
          %164 = sbr.rel (%p162) target = $region20
        $region19: #{tpu_custom_call.1} parent=11 // pred_region
          _
        $region20: #{tpu_custom_call.1} parent=11 // pred_fallthru
          _
      $region12: #{tpu_custom_call.1} parent=5 // pred_fallthru
        _
      %p165 = scmp.lt.s32.totalorder %s14, 2
      // Predicated region
      $region21: #{tpu_custom_call.1} parent=5 // pred_check
        %p166 = pneg %p165
      $region22: #{tpu_custom_call.1} parent=5 // pred_check_branch
        %168 = sbr.rel (%p166) target = $region24
      $region23: #{tpu_custom_call.1} parent=5 // pred_region
        // Predicated region
        $region25: #{tpu_custom_call.1} parent=23 // pred_check
          %p169 = pneg %p34
        $region26: #{tpu_custom_call.1} parent=23 // pred_check_branch
          %171 = sbr.rel (%p169) target = $region28
        $region27: #{tpu_custom_call.1} parent=23 // pred_region
          %s172 = smul.u32 2, %s14
          %p173 = scmp.lt.s32.totalorder %s172, 3
          %s174 = scalar_select %p173, %s172, 3
          %s175 = smul.addr %s174, 8
          %s176 = scalar_lea.vmem %s0, %s175
          %s177 = smul.u32 2, %s14
        $region28: #{tpu_custom_call.1} parent=23 // pred_fallthru
          _
        // Predicated region
        $region29: #{tpu_custom_call.1} parent=23 // pred_check
          %p178 = pneg %p60
        $region30: #{tpu_custom_call.1} parent=23 // pred_check_branch
          %180 = sbr.rel (%p178) target = $region32
        $region31: #{tpu_custom_call.1} parent=23 // pred_region
          %s181 = smul.u32 2, %s14
          %p182 = scmp.lt.s32.totalorder %s181, 3
          %s183 = scalar_select %p182, %s181, 3
          %s184 = smul.addr %s183, 8
          %s185 = scalar_lea.vmem %s1, %s184
          %s186 = smul.u32 2, %s14
        $region32: #{tpu_custom_call.1} parent=23 // pred_fallthru
          _
      $region24: #{tpu_custom_call.1} parent=5 // pred_fallthru
        _
      %p187 = scmp.le.s32.totalorder 1, %s14
      %p188 = scmp.lt.s32.totalorder %s14, 3
      %p189 = pnand %p187, %p188
      %p190 = pneg %p189
      // Predicated region
      $region33: #{tpu_custom_call.1} parent=5 // pred_check
        _
      $region34: #{tpu_custom_call.1} parent=5 // pred_check_branch
        %192 = sbr.rel (%p189) target = $region36
      $region35: #{tpu_custom_call.1} parent=5 // pred_region
        %s193 = ssub.s32 %s14, 1
        // Predicated region
        $region37: #{tpu_custom_call.1} parent=35 // pred_check
          %p194 = pneg %p87
        $region38: #{tpu_custom_call.1} parent=35 // pred_check_branch
          %196 = sbr.rel (%p194) target = $region40
        $region39: #{tpu_custom_call.1} parent=35 // pred_region
          %197 = dma.done [#allocation3], 256
        $region40: #{tpu_custom_call.1} parent=35 // pred_fallthru
          _
        %s198 = smul.u32 2, %s19
        %p199 = scmp.lt.s32.totalorder %s198, 3
        %s200 = scalar_select %p199, %s198, 3
        %s201 = smul.addr %s200, 8
        %s202 = scalar_lea.vmem %s0, %s201
        %p203 = pneg %p40
        %p204 = pneg %p37
        %s205 = smul.u32 2, %s19
        %p206 = scmp.lt.s32.totalorder %s205, 3
        %s207 = scalar_select %p206, %s205, 3
        %s208 = smul.addr %s207, 8
        %s209 = scalar_lea.vmem %s1, %s208
        %p210 = pneg %p66
        %p211 = pneg %p63
        %p212 = pneg %p87
        %p213 = pneg %p84
        %p214 = pneg %p108
        %p215 = pneg %p105
        %p216 = pneg %p134
        %p217 = pneg %p131
        %s218 = sand.u32 %s121, 1
        %s219 = scalar_lea.sflag [#allocation4], %s218
        %s220 = sand.u32 %s121, 1
        %s221 = smul.addr %s220, 16
        %s222 = scalar_lea.vmem [#allocation5], %s221
        %s223 = smul.u32 2, %s19
        %p224 = scmp.lt.s32.totalorder %s223, 3
        %s225 = scalar_select %p224, %s223, 3
        %s226 = smul.addr %s225, 8
        %s227 = scalar_lea.vmem %s0, %s226
        %s228 = smul.u32 2, %s19
        %s229 = smul.u32 2, %s19
        %p230 = scmp.lt.s32.totalorder %s229, 3
        %s231 = scalar_select %p230, %s229, 3
        %s232 = smul.addr %s231, 8
        %s233 = scalar_lea.vmem %s1, %s232
        %s234 = smul.u32 2, %s19
        %s235 = smul.u32 2, %s19
        %v236 = vld [vmem:[%s233] sm:$0xff]
        %v237 = vld [vmem:[%s233 + $0x8] sm:$0xff]
        %v238 = vld [vmem:[%s3] sm:$0x1]
        %v239 = vld [vmem:[#allocation2] sm:$0xff]
        %v241 = vlaneseq
        %v242 = vshrl.u32 %v241, 7
        %v243 = vsub.s32 0, %v242
        %v244 = vrot.slane %v238, %v243
        %vm246 = vcmask 64512
        %v248 = vsel %vm246, %v236, 0
        %v251 = vsel %vm246, %v237, 0
        %253 = vmatprep.subr.mxu0 0.0
        %254 = vmatpush1.msra.mxu0 %v239
        %255 = vmatprep.subr.mxu0 0.0
        %256 = vmatpush1.msra.mxu0 0.0
        %257 = vmatprep.subr.mxu0 0.0
        %258 = vmatpush1.msra.mxu0 0.0
        %259 = vmatprep.subr.mxu0 0.0
        %260 = vmatpush1.msra.mxu0 0.0
        %261 = vmatprep.subr.mxu0 0.0
        %262 = vmatpush1.msra.mxu0 0.0
        %263 = vmatprep.subr.mxu0 0.0
        %264 = vmatpush1.msra.mxu0 0.0
        %265 = vmatprep.subr.mxu0 0.0
        %266 = vmatpush1.msra.mxu0 0.0
        %267 = vmatprep.subr.mxu0 0.0
        %268 = vmatpush1.msra.mxu0 0.0
        %269 = vmatprep.subr.mxu0 0.0
        %270 = vmatpush1.msra.mxu0 0.0
        %271 = vmatprep.subr.mxu0 0.0
        %272 = vmatpush1.msra.mxu0 0.0
        %273 = vmatprep.subr.mxu0 0.0
        %274 = vmatpush1.msra.mxu0 0.0
        %275 = vmatprep.subr.mxu0 0.0
        %276 = vmatpush1.msra.mxu0 0.0
        %277 = vmatprep.subr.mxu0 0.0
        %278 = vmatpush1.msra.mxu0 0.0
        %279 = vmatprep.subr.mxu0 0.0
        %280 = vmatpush1.msra.mxu0 0.0
        %281 = vmatprep.subr.mxu0 0.0
        %282 = vmatpush1.msra.mxu0 0.0
        %283 = vmatprep.subr.mxu0 0.0
        %284 = vmatpush1.msra.mxu0 0.0
        %285 = vmatprep.subr.mxu0 0.0
        %286 = vmatpush1.msra.mxu0 0.0
        %287 = vmatprep.subr.mxu0 0.0
        %288 = vmatpush1.msra.mxu0 0.0
        %289 = vmatprep.subr.mxu0 0.0
        %290 = vmatpush1.msra.mxu0 0.0
        %291 = vmatprep.subr.mxu0 0.0
        %292 = vmatpush1.msra.mxu0 0.0
        %293 = vmatprep.subr.mxu0 0.0
        %294 = vmatpush1.msra.mxu0 0.0
        %295 = vmatprep.subr.mxu0 0.0
        %296 = vmatpush1.msra.mxu0 0.0
        %297 = vmatprep.subr.mxu0 0.0
        %298 = vmatpush1.msra.mxu0 0.0
        %299 = vmatprep.subr.mxu0 0.0
        %300 = vmatpush1.msra.mxu0 0.0
        %301 = vmatprep.subr.mxu0 0.0
        %302 = vmatpush1.msra.mxu0 0.0
        %303 = vmatprep.subr.mxu0 0.0
        %304 = vmatpush1.msra.mxu0 0.0
        %305 = vmatprep.subr.mxu0 0.0
        %306 = vmatpush1.msra.mxu0 0.0
        %307 = vmatprep.subr.mxu0 0.0
        %308 = vmatpush1.msra.mxu0 0.0
        %309 = vmatprep.subr.mxu0 0.0
        %310 = vmatpush1.msra.mxu0 0.0
        %311 = vmatprep.subr.mxu0 0.0
        %312 = vmatpush1.msra.mxu0 0.0
        %313 = vmatprep.subr.mxu0 0.0
        %314 = vmatpush1.msra.mxu0 0.0
        %315 = vmatprep.subr.mxu0 0.0
        %316 = vmatpush1.msra.mxu0 0.0
        %317 = vmatprep.mubr.f32.mxu0 0.0
        %318 = vmatmul.mubr.f32.gmra.mrb[0].mxu0 %v248
        %v319 = vpop.f32.mrb[0].mxu0
        %v320 = vadd.f32 %v244, %v319
        %v321 = vpop.f32.mrb[0].mxu0
        %322 = vmatprep.mubr.f32.mxu0 0.0
        %323 = vmatmul.mubr.f32.gmra.mrb[0].mxu0 %v251
        %v324 = vpop.f32.mrb[0].mxu0
        %v325 = vadd.f32 %v244, %v324
        %v326 = vpop.f32.mrb[0].mxu0
        %327 = vdwg.mxu0
        %v328 = vand.u32 2147483647, %v320
        %vm329 = vcmp.le.f32.partialorder %v328, 0.7853982
        %vm330 = vcmp.lt.s32.totalorder %v320, 0
        %v331 = vand.u32 %v320, 2139095040
        %v332 = vshrl.u32 %v331, 23
        %v333 = vsub.s32 %v332, 127
        %v334 = vand.u32 2147483647, %v320
        %v335 = vand.u32 %v334, 8388607
        %v336 = vor.u32 %v335, 8388608
        %v337 = vsub.s32 0, %v336
        %v338 = vadd.s32 %v333, 1
        %vm339 = vcmp.gt.s32.totalorder %v338, 0
        %v340 = vsel %vm339, %v338, 0
        %v341 = vshrl.u32 %v340, 5
        %v342 = vand.u32 %v340, 31
        %v343 = vsub.s32 32, %v342
        %v344 = vshrl.u32 683565275, %v343
        %v345 = vshll.u32 683565275, %v342
        %v346 = vshrl.u32 2475754826, %v343
        %v347 = vor.u32 %v345, %v346
        %v348 = vshll.u32 2475754826, %v342
        %v349 = vshrl.u32 2131351028, %v343
        %v350 = vor.u32 %v348, %v349
        %v351 = vshll.u32 2131351028, %v342
        %v352 = vshrl.u32 2102212464, %v343
        %v353 = vor.u32 %v351, %v352
        %v354 = vshll.u32 2102212464, %v342
        %v355 = vshrl.u32 920167782, %v343
        %v356 = vor.u32 %v354, %v355
        %v357 = vshll.u32 920167782, %v342
        %v358 = vshrl.u32 1326507024, %v343
        %v359 = vor.u32 %v357, %v358
        %vm360 = vcmp.lt.s32.totalorder %v341, 1
        %vm361 = vcmp.lt.s32.totalorder %v341, 2
        %vm362 = vcmp.lt.s32.totalorder %v341, 3
        %vm363 = vcmp.lt.s32.totalorder %v341, 4
        %v364 = vsel %vm360, %v344, %v347
        %v365 = vsel %vm363, %v353, 2102212464
        %v366 = vsel %vm362, %v350, %v365
        %v367 = vsel %vm361, %v364, %v366
        %v368 = vsel %vm360, %v347, %v350
        %v369 = vsel %vm363, %v356, 920167782
        %v370 = vsel %vm362, %v353, %v369
        %v371 = vsel %vm361, %v368, %v370
        %v372 = vsel %vm360, %v350, %v353
        %v373 = vsel %vm363, %v359, 1326507024
        %v374 = vsel %vm362, %v356, %v373
        %v375 = vsel %vm361, %v372, %v374
        %v376 = vshll.u32 %v336, 8
        %v377 = vmul.u32.u64.compose %v376, %v375
        %v378 = vextract.low.u32 %v377
        %v379 = vextract.high.u32 %v377
        %v380 = vmul.u32.u64.compose %v376, %v371
        %v381 = vextract.low.u32 %v380
        %v382 = vextract.high.u32 %v380
        %v383 = vmul.u32 %v376, %v367
        %v384 = vadd.s32 %v379, %v381
        %vm385 = vc.u32 %v379, %v381
        %v386 = vadd.s32 %v382, 1
        %v387 = vsel %vm385, %v386, %v382
        %v388 = vadd.s32 %v383, %v387
        %v389 = vadd.s32 %v388, 536870912
        %v390 = vshrl.u32 %v389, 30
        %v391 = vshll.u32 %v390, 30
        %v392 = vsub.s32 %v388, %v391
        %vm393 = vcmp.lt.s32.totalorder %v392, 0
        %v394 = vsub.s32 0, %v392
        %v395 = vsel %vm393, %v394, %v392
        %v396 = vclz %v395
        %v397 = vsub.s32 %v396, 2
        %vm398 = vcmp.gt.s32.totalorder 0, %v397
        %v399 = vsel %vm398, 0, %v397
        %v400 = vsub.s32 32, %v399
        %v401 = vshll.u32 %v392, %v399
        %v402 = vshrl.u32 %v384, %v400
        %v403 = vor.u32 %v401, %v402
        %v404 = vsub.s32 4294967266, %v399
        %v405 = vadd.s32 %v404, 127
        %v406 = vshll.u32 %v405, 23
        %v407 = vor.u32 4788187, %v406
        %v408 = vand.u32 2147483647, %v407
        %v410 = vcvt.s32.f32 %v403
        %v411 = vmul.f32 %v410, %v408
        %v412 = vxor.u32 %v411, 2147483648
        %v413 = vsel %vm330, %v412, %v411
        %v414 = vsub.s32 4, %v390
        %v415 = vsel %vm330, %v414, %v390
        %v416 = vsel %vm329, %v320, %v413
        %v417 = vsel %vm329, 0, %v415
        %v418 = vcosq.f32.pop %v416
        %v419 = vsinq.f32.pop %v416
        %vm420 = vweird.f32 %v320
        %v421 = vadd.s32 %v417, 3
        %v422 = vand.u32 %v421, 3
        %vm423 = vcmp.lt.s32.totalorder %v422, 2
        %vm424 = vcmp.eq.s32.totalorder %v422, 0
        %v425 = vxor.u32 %v419, 2147483648
        %v426 = vsel %vm424, %v418, %v425
        %vm427 = vcmp.eq.s32.totalorder %v422, 2
        %v428 = vxor.u32 %v418, 2147483648
        %v429 = vsel %vm427, %v428, %v419
        %v430 = vsel %vm423, %v426, %v429
        %v431 = vsel %vm420, nan, %v430
        %v432 = vand.u32 2147483647, %v325
        %vm433 = vcmp.le.f32.partialorder %v432, 0.7853982
        %vm434 = vcmp.lt.s32.totalorder %v325, 0
        %v435 = vand.u32 %v325, 2139095040
        %v436 = vshrl.u32 %v435, 23
        %v437 = vsub.s32 %v436, 127
        %v438 = vand.u32 2147483647, %v325
        %v439 = vand.u32 %v438, 8388607
        %v440 = vor.u32 %v439, 8388608
        %v441 = vsub.s32 0, %v440
        %v442 = vadd.s32 %v437, 1
        %vm443 = vcmp.gt.s32.totalorder %v442, 0
        %v444 = vsel %vm443, %v442, 0
        %v445 = vshrl.u32 %v444, 5
        %v446 = vand.u32 %v444, 31
        %v447 = vsub.s32 32, %v446
        %v448 = vshrl.u32 683565275, %v447
        %v449 = vshll.u32 683565275, %v446
        %v450 = vshrl.u32 2475754826, %v447
        %v451 = vor.u32 %v449, %v450
        %v452 = vshll.u32 2475754826, %v446
        %v453 = vshrl.u32 2131351028, %v447
        %v454 = vor.u32 %v452, %v453
        %v455 = vshll.u32 2131351028, %v446
        %v456 = vshrl.u32 2102212464, %v447
        %v457 = vor.u32 %v455, %v456
        %v458 = vshll.u32 2102212464, %v446
        %v459 = vshrl.u32 920167782, %v447
        %v460 = vor.u32 %v458, %v459
        %v461 = vshll.u32 920167782, %v446
        %v462 = vshrl.u32 1326507024, %v447
        %v463 = vor.u32 %v461, %v462
        %vm464 = vcmp.lt.s32.totalorder %v445, 1
        %vm465 = vcmp.lt.s32.totalorder %v445, 2
        %vm466 = vcmp.lt.s32.totalorder %v445, 3
        %vm467 = vcmp.lt.s32.totalorder %v445, 4
        %v468 = vsel %vm464, %v448, %v451
        %v469 = vsel %vm467, %v457, 2102212464
        %v470 = vsel %vm466, %v454, %v469
        %v471 = vsel %vm465, %v468, %v470
        %v472 = vsel %vm464, %v451, %v454
        %v473 = vsel %vm467, %v460, 920167782
        %v474 = vsel %vm466, %v457, %v473
        %v475 = vsel %vm465, %v472, %v474
        %v476 = vsel %vm464, %v454, %v457
        %v477 = vsel %vm467, %v463, 1326507024
        %v478 = vsel %vm466, %v460, %v477
        %v479 = vsel %vm465, %v476, %v478
        %v480 = vshll.u32 %v440, 8
        %v481 = vmul.u32.u64.compose %v480, %v479
        %v482 = vextract.low.u32 %v481
        %v483 = vextract.high.u32 %v481
        %v484 = vmul.u32.u64.compose %v480, %v475
        %v485 = vextract.low.u32 %v484
        %v486 = vextract.high.u32 %v484
        %v487 = vmul.u32 %v480, %v471
        %v488 = vadd.s32 %v483, %v485
        %vm489 = vc.u32 %v483, %v485
        %v490 = vadd.s32 %v486, 1
        %v491 = vsel %vm489, %v490, %v486
        %v492 = vadd.s32 %v487, %v491
        %v493 = vadd.s32 %v492, 536870912
        %v494 = vshrl.u32 %v493, 30
        %v495 = vshll.u32 %v494, 30
        %v496 = vsub.s32 %v492, %v495
        %vm497 = vcmp.lt.s32.totalorder %v496, 0
        %v498 = vsub.s32 0, %v496
        %v499 = vsel %vm497, %v498, %v496
        %v500 = vclz %v499
        %v501 = vsub.s32 %v500, 2
        %vm502 = vcmp.gt.s32.totalorder 0, %v501
        %v503 = vsel %vm502, 0, %v501
        %v504 = vsub.s32 32, %v503
        %v505 = vshll.u32 %v496, %v503
        %v506 = vshrl.u32 %v488, %v504
        %v507 = vor.u32 %v505, %v506
        %v508 = vsub.s32 4294967266, %v503
        %v509 = vadd.s32 %v508, 127
        %v510 = vshll.u32 %v509, 23
        %v511 = vor.u32 4788187, %v510
        %v512 = vand.u32 2147483647, %v511
        %v514 = vcvt.s32.f32 %v507
        %v515 = vmul.f32 %v514, %v512
        %v516 = vxor.u32 %v515, 2147483648
        %v517 = vsel %vm434, %v516, %v515
        %v518 = vsub.s32 4, %v494
        %v519 = vsel %vm434, %v518, %v494
        %v520 = vsel %vm433, %v325, %v517
        %v521 = vsel %vm433, 0, %v519
        %v522 = vcosq.f32.pop %v520
        %v523 = vsinq.f32.pop %v520
        %vm524 = vweird.f32 %v325
        %v525 = vadd.s32 %v521, 3
        %v526 = vand.u32 %v525, 3
        %vm527 = vcmp.lt.s32.totalorder %v526, 2
        %vm528 = vcmp.eq.s32.totalorder %v526, 0
        %v529 = vxor.u32 %v523, 2147483648
        %v530 = vsel %vm528, %v522, %v529
        %vm531 = vcmp.eq.s32.totalorder %v526, 2
        %v532 = vxor.u32 %v522, 2147483648
        %v533 = vsel %vm531, %v532, %v523
        %v534 = vsel %vm527, %v530, %v533
        %v535 = vsel %vm524, nan, %v534
        %s536 = scalar_lea.vmem [#allocation2], 8
        %v537 = vld [vmem:[%s536] sm:$0xff]
        %538 = vmatprep.subr.mxu0 0.0
        %539 = vmatpush1.msra.mxu0 %v537
        %540 = vmatprep.subr.mxu0 0.0
        %541 = vmatpush1.msra.mxu0 0.0
        %542 = vmatprep.subr.mxu0 0.0
        %543 = vmatpush1.msra.mxu0 0.0
        %544 = vmatprep.subr.mxu0 0.0
        %545 = vmatpush1.msra.mxu0 0.0
        %546 = vmatprep.subr.mxu0 0.0
        %547 = vmatpush1.msra.mxu0 0.0
        %548 = vmatprep.subr.mxu0 0.0
        %549 = vmatpush1.msra.mxu0 0.0
        %550 = vmatprep.subr.mxu0 0.0
        %551 = vmatpush1.msra.mxu0 0.0
        %552 = vmatprep.subr.mxu0 0.0
        %553 = vmatpush1.msra.mxu0 0.0
        %554 = vmatprep.subr.mxu0 0.0
        %555 = vmatpush1.msra.mxu0 0.0
        %556 = vmatprep.subr.mxu0 0.0
        %557 = vmatpush1.msra.mxu0 0.0
        %558 = vmatprep.subr.mxu0 0.0
        %559 = vmatpush1.msra.mxu0 0.0
        %560 = vmatprep.subr.mxu0 0.0
        %561 = vmatpush1.msra.mxu0 0.0
        %562 = vmatprep.subr.mxu0 0.0
        %563 = vmatpush1.msra.mxu0 0.0
        %564 = vmatprep.subr.mxu0 0.0
        %565 = vmatpush1.msra.mxu0 0.0
        %566 = vmatprep.subr.mxu0 0.0
        %567 = vmatpush1.msra.mxu0 0.0
        %568 = vmatprep.subr.mxu0 0.0
        %569 = vmatpush1.msra.mxu0 0.0
        %570 = vmatprep.subr.mxu0 0.0
        %571 = vmatpush1.msra.mxu0 0.0
        %572 = vmatprep.subr.mxu0 0.0
        %573 = vmatpush1.msra.mxu0 0.0
        %574 = vmatprep.subr.mxu0 0.0
        %575 = vmatpush1.msra.mxu0 0.0
        %576 = vmatprep.subr.mxu0 0.0
        %577 = vmatpush1.msra.mxu0 0.0
        %578 = vmatprep.subr.mxu0 0.0
        %579 = vmatpush1.msra.mxu0 0.0
        %580 = vmatprep.subr.mxu0 0.0
        %581 = vmatpush1.msra.mxu0 0.0
        %582 = vmatprep.subr.mxu0 0.0
        %583 = vmatpush1.msra.mxu0 0.0
        %584 = vmatprep.subr.mxu0 0.0
        %585 = vmatpush1.msra.mxu0 0.0
        %586 = vmatprep.subr.mxu0 0.0
        %587 = vmatpush1.msra.mxu0 0.0
        %588 = vmatprep.subr.mxu0 0.0
        %589 = vmatpush1.msra.mxu0 0.0
        %590 = vmatprep.subr.mxu0 0.0
        %591 = vmatpush1.msra.mxu0 0.0
        %592 = vmatprep.subr.mxu0 0.0
        %593 = vmatpush1.msra.mxu0 0.0
        %594 = vmatprep.subr.mxu0 0.0
        %595 = vmatpush1.msra.mxu0 0.0
        %596 = vmatprep.subr.mxu0 0.0
        %597 = vmatpush1.msra.mxu0 0.0
        %598 = vmatprep.subr.mxu0 0.0
        %599 = vmatpush1.msra.mxu0 0.0
        %600 = vmatprep.subr.mxu0 0.0
        %601 = vmatpush1.msra.mxu0 0.0
        %602 = vmatprep.mubr.f32.mxu0 0.0
        %603 = vmatmul.mubr.f32.gmra.mrb[0].mxu0 %v248
        %v604 = vpop.f32.mrb[0].mxu0
        %v605 = vadd.f32 %v244, %v604
        %v606 = vpop.f32.mrb[0].mxu0
        %607 = vmatprep.mubr.f32.mxu0 0.0
        %608 = vmatmul.mubr.f32.gmra.mrb[0].mxu0 %v251
        %v609 = vpop.f32.mrb[0].mxu0
        %v610 = vadd.f32 %v244, %v609
        %v611 = vpop.f32.mrb[0].mxu0
        %612 = vdwg.mxu0
        %v613 = vand.u32 2147483647, %v605
        %vm614 = vcmp.le.f32.partialorder %v613, 0.7853982
        %vm615 = vcmp.lt.s32.totalorder %v605, 0
        %v616 = vand.u32 %v605, 2139095040
        %v617 = vshrl.u32 %v616, 23
        %v618 = vsub.s32 %v617, 127
        %v619 = vand.u32 2147483647, %v605
        %v620 = vand.u32 %v619, 8388607
        %v621 = vor.u32 %v620, 8388608
        %v622 = vsub.s32 0, %v621
        %v623 = vadd.s32 %v618, 1
        %vm624 = vcmp.gt.s32.totalorder %v623, 0
        %v625 = vsel %vm624, %v623, 0
        %v626 = vshrl.u32 %v625, 5
        %v627 = vand.u32 %v625, 31
        %v628 = vsub.s32 32, %v627
        %v629 = vshrl.u32 683565275, %v628
        %v630 = vshll.u32 683565275, %v627
        %v631 = vshrl.u32 2475754826, %v628
        %v632 = vor.u32 %v630, %v631
        %v633 = vshll.u32 2475754826, %v627
        %v634 = vshrl.u32 2131351028, %v628
        %v635 = vor.u32 %v633, %v634
        %v636 = vshll.u32 2131351028, %v627
        %v637 = vshrl.u32 2102212464, %v628
        %v638 = vor.u32 %v636, %v637
        %v639 = vshll.u32 2102212464, %v627
        %v640 = vshrl.u32 920167782, %v628
        %v641 = vor.u32 %v639, %v640
        %v642 = vshll.u32 920167782, %v627
        %v643 = vshrl.u32 1326507024, %v628
        %v644 = vor.u32 %v642, %v643
        %vm645 = vcmp.lt.s32.totalorder %v626, 1
        %vm646 = vcmp.lt.s32.totalorder %v626, 2
        %vm647 = vcmp.lt.s32.totalorder %v626, 3
        %vm648 = vcmp.lt.s32.totalorder %v626, 4
        %v649 = vsel %vm645, %v629, %v632
        %v650 = vsel %vm648, %v638, 2102212464
        %v651 = vsel %vm647, %v635, %v650
        %v652 = vsel %vm646, %v649, %v651
        %v653 = vsel %vm645, %v632, %v635
        %v654 = vsel %vm648, %v641, 920167782
        %v655 = vsel %vm647, %v638, %v654
        %v656 = vsel %vm646, %v653, %v655
        %v657 = vsel %vm645, %v635, %v638
        %v658 = vsel %vm648, %v644, 1326507024
        %v659 = vsel %vm647, %v641, %v658
        %v660 = vsel %vm646, %v657, %v659
        %v661 = vshll.u32 %v621, 8
        %v662 = vmul.u32.u64.compose %v661, %v660
        %v663 = vextract.low.u32 %v662
        %v664 = vextract.high.u32 %v662
        %v665 = vmul.u32.u64.compose %v661, %v656
        %v666 = vextract.low.u32 %v665
        %v667 = vextract.high.u32 %v665
        %v668 = vmul.u32 %v661, %v652
        %v669 = vadd.s32 %v664, %v666
        %vm670 = vc.u32 %v664, %v666
        %v671 = vadd.s32 %v667, 1
        %v672 = vsel %vm670, %v671, %v667
        %v673 = vadd.s32 %v668, %v672
        %v674 = vadd.s32 %v673, 536870912
        %v675 = vshrl.u32 %v674, 30
        %v676 = vshll.u32 %v675, 30
        %v677 = vsub.s32 %v673, %v676
        %vm678 = vcmp.lt.s32.totalorder %v677, 0
        %v679 = vsub.s32 0, %v677
        %v680 = vsel %vm678, %v679, %v677
        %v681 = vclz %v680
        %v682 = vsub.s32 %v681, 2
        %vm683 = vcmp.gt.s32.totalorder 0, %v682
        %v684 = vsel %vm683, 0, %v682
        %v685 = vsub.s32 32, %v684
        %v686 = vshll.u32 %v677, %v684
        %v687 = vshrl.u32 %v669, %v685
        %v688 = vor.u32 %v686, %v687
        %v689 = vsub.s32 4294967266, %v684
        %v690 = vadd.s32 %v689, 127
        %v691 = vshll.u32 %v690, 23
        %v692 = vor.u32 4788187, %v691
        %v693 = vand.u32 2147483647, %v692
        %v695 = vcvt.s32.f32 %v688
        %v696 = vmul.f32 %v695, %v693
        %v697 = vxor.u32 %v696, 2147483648
        %v698 = vsel %vm615, %v697, %v696
        %v699 = vsub.s32 4, %v675
        %v700 = vsel %vm615, %v699, %v675
        %v701 = vsel %vm614, %v605, %v698
        %v702 = vsel %vm614, 0, %v700
        %v703 = vcosq.f32.pop %v701
        %v704 = vsinq.f32.pop %v701
        %vm705 = vweird.f32 %v605
        %v706 = vadd.s32 %v702, 3
        %v707 = vand.u32 %v706, 3
        %vm708 = vcmp.lt.s32.totalorder %v707, 2
        %vm709 = vcmp.eq.s32.totalorder %v707, 0
        %v710 = vxor.u32 %v704, 2147483648
        %v711 = vsel %vm709, %v703, %v710
        %vm712 = vcmp.eq.s32.totalorder %v707, 2
        %v713 = vxor.u32 %v703, 2147483648
        %v714 = vsel %vm712, %v713, %v704
        %v715 = vsel %vm708, %v711, %v714
        %v716 = vsel %vm705, nan, %v715
        %v717 = vand.u32 2147483647, %v610
        %vm718 = vcmp.le.f32.partialorder %v717, 0.7853982
        %vm719 = vcmp.lt.s32.totalorder %v610, 0
        %v720 = vand.u32 %v610, 2139095040
        %v721 = vshrl.u32 %v720, 23
        %v722 = vsub.s32 %v721, 127
        %v723 = vand.u32 2147483647, %v610
        %v724 = vand.u32 %v723, 8388607
        %v725 = vor.u32 %v724, 8388608
        %v726 = vsub.s32 0, %v725
        %v727 = vadd.s32 %v722, 1
        %vm728 = vcmp.gt.s32.totalorder %v727, 0
        %v729 = vsel %vm728, %v727, 0
        %v730 = vshrl.u32 %v729, 5
        %v731 = vand.u32 %v729, 31
        %v732 = vsub.s32 32, %v731
        %v733 = vshrl.u32 683565275, %v732
        %v734 = vshll.u32 683565275, %v731
        %v735 = vshrl.u32 2475754826, %v732
        %v736 = vor.u32 %v734, %v735
        %v737 = vshll.u32 2475754826, %v731
        %v738 = vshrl.u32 2131351028, %v732
        %v739 = vor.u32 %v737, %v738
        %v740 = vshll.u32 2131351028, %v731
        %v741 = vshrl.u32 2102212464, %v732
        %v742 = vor.u32 %v740, %v741
        %v743 = vshll.u32 2102212464, %v731
        %v744 = vshrl.u32 920167782, %v732
        %v745 = vor.u32 %v743, %v744
        %v746 = vshll.u32 920167782, %v731
        %v747 = vshrl.u32 1326507024, %v732
        %v748 = vor.u32 %v746, %v747
        %vm749 = vcmp.lt.s32.totalorder %v730, 1
        %vm750 = vcmp.lt.s32.totalorder %v730, 2
        %vm751 = vcmp.lt.s32.totalorder %v730, 3
        %vm752 = vcmp.lt.s32.totalorder %v730, 4
        %v753 = vsel %vm749, %v733, %v736
        %v754 = vsel %vm752, %v742, 2102212464
        %v755 = vsel %vm751, %v739, %v754
        %v756 = vsel %vm750, %v753, %v755
        %v757 = vsel %vm749, %v736, %v739
        %v758 = vsel %vm752, %v745, 920167782
        %v759 = vsel %vm751, %v742, %v758
        %v760 = vsel %vm750, %v757, %v759
        %v761 = vsel %vm749, %v739, %v742
        %v762 = vsel %vm752, %v748, 1326507024
        %v763 = vsel %vm751, %v745, %v762
        %v764 = vsel %vm750, %v761, %v763
        %v765 = vshll.u32 %v725, 8
        %v766 = vmul.u32.u64.compose %v765, %v764
        %v767 = vextract.low.u32 %v766
        %v768 = vextract.high.u32 %v766
        %v769 = vmul.u32.u64.compose %v765, %v760
        %v770 = vextract.low.u32 %v769
        %v771 = vextract.high.u32 %v769
        %v772 = vmul.u32 %v765, %v756
        %v773 = vadd.s32 %v768, %v770
        %vm774 = vc.u32 %v768, %v770
        %v775 = vadd.s32 %v771, 1
        %v776 = vsel %vm774, %v775, %v771
        %v777 = vadd.s32 %v772, %v776
        %v778 = vadd.s32 %v777, 536870912
        %v779 = vshrl.u32 %v778, 30
        %v780 = vshll.u32 %v779, 30
        %v781 = vsub.s32 %v777, %v780
        %vm782 = vcmp.lt.s32.totalorder %v781, 0
        %v783 = vsub.s32 0, %v781
        %v784 = vsel %vm782, %v783, %v781
        %v785 = vclz %v784
        %v786 = vsub.s32 %v785, 2
        %vm787 = vcmp.gt.s32.totalorder 0, %v786
        %v788 = vsel %vm787, 0, %v786
        %v789 = vsub.s32 32, %v788
        %v790 = vshll.u32 %v781, %v788
        %v791 = vshrl.u32 %v773, %v789
        %v792 = vor.u32 %v790, %v791
        %v793 = vsub.s32 4294967266, %v788
        %v794 = vadd.s32 %v793, 127
        %v795 = vshll.u32 %v794, 23
        %v796 = vor.u32 4788187, %v795
        %v797 = vand.u32 2147483647, %v796
        %v799 = vcvt.s32.f32 %v792
        %v800 = vmul.f32 %v799, %v797
        %v801 = vxor.u32 %v800, 2147483648
        %v802 = vsel %vm719, %v801, %v800
        %v803 = vsub.s32 4, %v779
        %v804 = vsel %vm719, %v803, %v779
        %v805 = vsel %vm718, %v610, %v802
        %v806 = vsel %vm718, 0, %v804
        %v807 = vcosq.f32.pop %v805
        %v808 = vsinq.f32.pop %v805
        %vm809 = vweird.f32 %v610
        %v810 = vadd.s32 %v806, 3
        %v811 = vand.u32 %v810, 3
        %vm812 = vcmp.lt.s32.totalorder %v811, 2
        %vm813 = vcmp.eq.s32.totalorder %v811, 0
        %v814 = vxor.u32 %v808, 2147483648
        %v815 = vsel %vm813, %v807, %v814
        %vm816 = vcmp.eq.s32.totalorder %v811, 2
        %v817 = vxor.u32 %v807, 2147483648
        %v818 = vsel %vm816, %v817, %v808
        %v819 = vsel %vm812, %v815, %v818
        %v820 = vsel %vm809, nan, %v819
        %v821 = vadd.f32 %v431, %v716
        %v822 = vadd.f32 %v535, %v820
        %v823 = vld [vmem:[%s227] sm:$0xff]
        %v824 = vld [vmem:[%s227 + $0x8] sm:$0xff]
        %v825 = vmul.f32 %v821, 0.5
        %v826 = vmul.f32 %v822, 0.5
        %v827 = vadd.f32 %v823, %v825
        %v828 = vadd.f32 %v824, %v826
        %829 = vst [vmem:[%s222] sm:$0xff] %v827
        %830 = vst [vmem:[%s222 + $0x8] sm:$0xff] %v828
        %s831 = sand.u32 %s121, 1
        %s832 = scalar_lea.sflag [#allocation4], %s831
        %s833 = sand.u32 %s121, 1
        %s834 = smul.addr %s833, 16
        %s835 = scalar_lea.vmem [#allocation5], %s834
        // Predicated region
        $region41: #{tpu_custom_call.1} parent=35 // pred_check
          %p836 = pneg %p131
        $region42: #{tpu_custom_call.1} parent=35 // pred_check_branch
          %838 = sbr.rel (%p836) target = $region44
        $region43: #{tpu_custom_call.1} parent=35 // pred_region
          %s839 = smul.u32 2, %s19
          %s841 = ssub.s32 256, 256
          %842 = vsyncadd %s832, %s841
          %s843 = smul.addr %s839, 128
          %s844 = scalar_lea.hbm %s4, %s843
          %s845 = sshll.u32 %s835, 4
          %s846 = int_to_ptr.vmem [resolvable:$true] %s845
          %851 = dma.vmem_to_hbm [thread:$0]  %s846, 256, %s844, %s832, 128, 128, 8
        $region44: #{tpu_custom_call.1} parent=35 // pred_fallthru
          _
      $region36: #{tpu_custom_call.1} parent=5 // pred_fallthru
        _
      %p852 = scmp.le.s32.totalorder 2, %s14
      // Predicated region
      $region45: #{tpu_custom_call.1} parent=5 // pred_check
        %p853 = pneg %p852
      $region46: #{tpu_custom_call.1} parent=5 // pred_check_branch
        %855 = sbr.rel (%p853) target = $region48
      $region47: #{tpu_custom_call.1} parent=5 // pred_region
        %s856 = ssub.s32 %s14, 2
        // Predicated region
        $region49: #{tpu_custom_call.1} parent=47 // pred_check
          %p857 = pneg %p137
        $region50: #{tpu_custom_call.1} parent=47 // pred_check_branch
          %859 = sbr.rel (%p857) target = $region52
        $region51: #{tpu_custom_call.1} parent=47 // pred_region
          %s860 = sand.u32 %s122, 1
          %s861 = scalar_lea.sflag [#allocation4], %s860
          %s862 = sand.u32 %s122, 1
          %s863 = smul.addr %s862, 16
          %s864 = scalar_lea.vmem [#allocation5], %s863
          %865 = dma.done %s861, 256
        $region52: #{tpu_custom_call.1} parent=47 // pred_fallthru
          _
      $region48: #{tpu_custom_call.1} parent=5 // pred_fallthru
        _
    $region6: #{tpu_custom_call.1} parent=1 // loop_footer
      %s18 = sadd.s32 1, %s14
    $region7: #{tpu_custom_call.1} parent=1 // loop_footer_branch
      %13 = sbr.rel target = $region3
    $region8: #{tpu_custom_call.1} parent=1 // loop_exit
      _
    %866 = vsyncpa [#allocation3], 1
    %s867 = scalar_lea.sflag [#allocation3], 1
    %868 = vsyncpa %s867, 1
    %869 = vsyncpa [#allocation4], 1
    %s870 = scalar_lea.sflag [#allocation4], 1
    %871 = vsyncpa %s870, 1

</llo_original>
